<compile_context>
chip_gen: v6e
topology: v6e:2x2x1
jax: 0.10.0
libtpu: 0.0.40
codegen_flags: <defaults>
</compile_context>

<pallas_src>
import jax
import jax.numpy as jnp
from jax.experimental import pallas as pl
from jax.experimental.pallas import tpu as pltpu


def _round_up(n: int, m: int) -> int:
    return pl.cdiv(n, m) * m


def _ordinal_head_kernel(x_ref, wt_ref, b_ref, o_ref):
    # x_ref: (tb, in_dim), wt_ref: (in_dim, out_dim), b_ref: (1, out_dim) f32
    acc = jnp.dot(x_ref[...], wt_ref[...], preferred_element_type=jnp.float32)
    o_ref[...] = (acc + b_ref[...]).astype(o_ref.dtype)


def ordinal_head(x, weight, bias, *, tb_max: int = 8192):
    """Pallas implementation of nn.Linear(in_dim, num_classes - 1).

    Args:
      x:      (B, in_dim)
      weight: (out_dim, in_dim)   -- PyTorch nn.Linear layout
      bias:   (out_dim,)
    Returns:
      (B, out_dim) logits, same dtype as x.
    """
    B, in_dim = x.shape
    out_dim = weight.shape[0]

    # One-time transpose in the wrapper -> MXU-native (K sublane, N lane) RHS.
    w_t = weight.astype(x.dtype).T            # (in_dim, out_dim)
    b2 = bias.astype(jnp.float32).reshape(1, out_dim)

    # ---- Batch tiling without any wrapper-side padding of x.
    # n = number of batch tiles; keep >= 2 for large B so v7x's two TensorCores
    # both get work through the "parallel" grid axis (v5e/v6e: single TC, so the
    # bigger-tile choice is what matters there).
    n = pl.cdiv(B, tb_max)
    if B >= 256:
        n = max(n, 2)
    if n == 1:
        tb = B                                  # single block == full batch dim
    else:
        tb = min(tb_max, _round_up(pl.cdiv(B, n), 8))
    grid = (pl.cdiv(B, tb),)

    itemsize = jnp.dtype(x.dtype).itemsize
    cost = pl.CostEstimate(
        flops=2 * B * in_dim * out_dim,
        transcendentals=0,
        bytes_accessed=(itemsize * (B * in_dim + in_dim * out_dim + B * out_dim)
                        + 4 * out_dim),
    )

    out = pl.pallas_call(
        _ordinal_head_kernel,
        out_shape=jax.ShapeDtypeStruct((B, out_dim), x.dtype),
        grid=grid,
        in_specs=[
            pl.BlockSpec((tb, in_dim), lambda i: (i, 0)),       # x tile (pipelined)
            pl.BlockSpec((in_dim, out_dim), lambda i: (0, 0)),  # weight^T (resident)
            pl.BlockSpec((1, out_dim), lambda i: (0, 0)),       # bias     (resident)
        ],
        out_specs=pl.BlockSpec((tb, out_dim), lambda i: (i, 0)),  # narrow, lane=out_dim
        compiler_params=pltpu.CompilerParams(
            dimension_semantics=("parallel",)),                 # megacore-shardable
        cost_estimate=cost,
    )(x, w_t, b2)

    return out


# TODO(synk): if in_dim ever grows to multiple K, add a K reduction grid axis with
# an f32 VMEM accumulator (pl.when init/writeback) to bound per-step VMEM.


if __name__ == "__main__":
    key = jax.random.PRNGKey(0)
    k_x, k_w, k_b, k_x2, k_x3 = jax.random.split(key, 5)

    B, in_dim, num_classes = 2, 32, 5
    out_dim = num_classes - 1

    x = jax.random.normal(k_x, (B, in_dim), dtype=jnp.float32)
    # Deterministic synthetic parameters (nn.Linear shapes).
    weight = jax.random.normal(k_w, (out_dim, in_dim), dtype=jnp.float32) * 0.1
    bias = jax.random.normal(k_b, (out_dim,), dtype=jnp.float32) * 0.1

    out = jax.block_until_ready(ordinal_head(x, weight, bias))
    ref = x @ weight.T + bias
    assert out.shape == (B, out_dim)
    assert jnp.allclose(out, ref, atol=1e-5), "mismatch vs reference (small B)"

    # Multi-tile path: even split, no padding (B=1040 -> 2 tiles of 520 rows).
    B2 = 1040
    x2 = jax.random.normal(k_x2, (B2, in_dim), dtype=jnp.float32)
    out2 = jax.block_until_ready(ordinal_head(x2, weight, bias))
    ref2 = x2 @ weight.T + bias
    assert out2.shape == (B2, out_dim)
    assert jnp.allclose(out2, ref2, atol=1e-4), "mismatch vs reference (tiled B)"

    # Ragged last block path: B=1037 -> 2 tiles of 520, last block partial.
    B3 = 1037
    x3 = jax.random.normal(k_x3, (B3, in_dim), dtype=jnp.float32)
    out3 = jax.block_until_ready(ordinal_head(x3, weight, bias))
    ref3 = x3 @ weight.T + bias
    assert out3.shape == (B3, out_dim)
    assert jnp.allclose(out3, ref3, atol=1e-4), "mismatch vs reference (ragged B)"

    print("KERNEL_OK")
</pallas_src>

<mosaic_0001>
module attributes {stable_mosaic.version = 11 : i64} {
  func.func @_ordinal_head_kernel(%arg0: i32, %arg1: memref<2x32xf32, #tpu.memory_space<vmem>>, %arg2: memref<32x4xf32, #tpu.memory_space<vmem>>, %arg3: memref<1x4xf32, #tpu.memory_space<vmem>>, %arg4: memref<2x4xf32, #tpu.memory_space<vmem>>) attributes {dimension_semantics = [#tpu.dimension_semantics<parallel>], iteration_bounds = array<i64: 1>, scalar_prefetch = 0 : i64, scratch_operands = 0 : i64, tpu.core_type = #tpu.core_type<tc>, window_params = [{transform_indices = @transform_0, window_bounds = array<i64: 2, 32>}, {pipeline_mode = #tpu.pipeline_mode<synchronous>, transform_indices = @transform_1, window_bounds = array<i64: 32, 4>}, {pipeline_mode = #tpu.pipeline_mode<synchronous>, transform_indices = @transform_2, window_bounds = array<i64: 1, 4>}, {transform_indices = @transform_3, window_bounds = array<i64: 2, 4>}]} {
    %c0 = arith.constant 0 : index
    %c0_0 = arith.constant 0 : index
    %0 = vector.load %arg1[%c0, %c0_0] : memref<2x32xf32, #tpu.memory_space<vmem>>, vector<2x32xf32>
    %c0_1 = arith.constant 0 : index
    %c0_2 = arith.constant 0 : index
    %1 = vector.load %arg2[%c0_1, %c0_2] : memref<32x4xf32, #tpu.memory_space<vmem>>, vector<32x4xf32>
    %cst = arith.constant dense<0.000000e+00> : vector<2x4xf32>
    %2 = tpu.matmul %0, %1, %cst {dimension_numbers = #tpu.dot_dimension_numbers<[1], [0], [0], [1], [0, 0, 1, 1], [], []>} : vector<2x32xf32>, vector<32x4xf32>, vector<2x4xf32> -> vector<2x4xf32>
    %c0_3 = arith.constant 0 : index
    %c0_4 = arith.constant 0 : index
    %3 = vector.load %arg3[%c0_3, %c0_4] : memref<1x4xf32, #tpu.memory_space<vmem>>, vector<1x4xf32>
    %4 = vector.broadcast %3 : vector<1x4xf32> to vector<2x4xf32>
    %5 = arith.addf %2, %4 : vector<2x4xf32>
    %c0_5 = arith.constant 0 : index
    %c0_6 = arith.constant 0 : index
    %6 = vector.load %arg4[%c0_5, %c0_6] : memref<2x4xf32, #tpu.memory_space<vmem>>, vector<2x4xf32>
    tpu.vector_store %arg4[%c0_5, %c0_6], %5 {strides = array<i32>} : memref<2x4xf32, #tpu.memory_space<vmem>>, vector<2x4xf32>,
    return
  }
  func.func @transform_0(%arg0: i32) -> (i32, i32) {
    %c0_i32 = arith.constant 0 : i32
    %c0_i32_0 = arith.constant 0 : i32
    return %arg0, %c0_i32 : i32, i32
  }
  func.func @transform_1(%arg0: i32) -> (i32, i32) {
    %c0_i32 = arith.constant 0 : i32
    %c0_i32_0 = arith.constant 0 : i32
    %c0_i32_1 = arith.constant 0 : i32
    return %c0_i32, %c0_i32_0 : i32, i32
  }
  func.func @transform_2(%arg0: i32) -> (i32, i32) {
    %c0_i32 = arith.constant 0 : i32
    %c0_i32_0 = arith.constant 0 : i32
    %c0_i32_1 = arith.constant 0 : i32
    return %c0_i32, %c0_i32_0 : i32, i32
  }
  func.func @transform_3(%arg0: i32) -> (i32, i32) {
    %c0_i32 = arith.constant 0 : i32
    %c0_i32_0 = arith.constant 0 : i32
    return %arg0, %c0_i32 : i32, i32
  }
}

</mosaic_0001>

<llo_original>
// kernel: tpu_custom_call.1
$region0: #{tpu_custom_call.1}
  #allocation0 [shape = 'u32[]', space=smem, size = 0x4, offset = 0x4, fixed_abs, tag = 'smem constant byte address 0x4 - core index']
  #allocation1 [shape = 'u32[144,128]{1,0:T(1,128)}', space=vmem, size = 0x12000, scoped, tag = 'internal scratch']
  %s0 = inlined_call_operand.vmem [shape: f32[2,32], index: 0, kind: input, shape index: {}]
  %s1 = inlined_call_operand.vmem [shape: f32[32,4], index: 1, kind: input, shape index: {}]
  %s2 = inlined_call_operand.vmem [shape: f32[1,4], index: 2, kind: input, shape index: {}]
  %s3 = inlined_call_operand.hbm [shape: f32[2,4], index: 3, kind: output, shape index: {}]
  %s4 = sld [smem:[#allocation0]]
  $region22: #{tpu_custom_call.1} parent=0
    _
  %s6 = ssub.s32 1, %s4
  %s7 = scalar_select 0, %s6, %s4
  $region1: #{tpu_custom_call.1} parent=0
    #allocation2 [shape = 'u8[1024]{0}', space=vmem, size = 0x400, scoped, tag = 'output window, operand 0, single buffered']
    #allocation3 [shape = 's32[1]{0}', space=sflag, size = 0x4, scoped, tag = 'scoped memory for tpu_custom_call.1']
    %8 = vsyncpa [#allocation3], 0
    // Predicated region
    $region2: #{tpu_custom_call.1} parent=1 // pred_check
      _
    $region3: #{tpu_custom_call.1} parent=1 // pred_check_branch
      %10 = sbr.rel (0) target = $region5
    $region4: #{tpu_custom_call.1} parent=1 // pred_region
      _
    $region5: #{tpu_custom_call.1} parent=1 // pred_fallthru
      _
    // Predicated region
    $region6: #{tpu_custom_call.1} parent=1 // pred_check
      _
    $region7: #{tpu_custom_call.1} parent=1 // pred_check_branch
      %12 = sbr.rel (0) target = $region9
    $region8: #{tpu_custom_call.1} parent=1 // pred_region
      _
    $region9: #{tpu_custom_call.1} parent=1 // pred_fallthru
      _
    // Predicated region
    $region10: #{tpu_custom_call.1} parent=1 // pred_check
      _
    $region11: #{tpu_custom_call.1} parent=1 // pred_check_branch
      %14 = sbr.rel (0) target = $region13
    $region12: #{tpu_custom_call.1} parent=1 // pred_region
      _
    $region13: #{tpu_custom_call.1} parent=1 // pred_fallthru
      _
    %v15 = vld [vmem:[%s0] sm:$0x3]
    %v16 = vld [vmem:[%s1] sm:$0xff]
    %v17 = vld [vmem:[%s1 + $0x8] sm:$0xff]
    %v18 = vld [vmem:[%s1 + $0x10] sm:$0xff]
    %v19 = vld [vmem:[%s1 + $0x18] sm:$0xff]
    %v20 = vld [vmem:[%s2] sm:$0x1]
    %v22 = vlaneseq
    %v23 = vshrl.u32 %v22, 7
    %v24 = vsub.s32 0, %v23
    %v25 = vrot.slane %v20, %v24
    %vm27 = vcmask 261120
    %v29 = vsel %vm27, %v15, 0
    %31 = vmatprep.subr.mxu0 0.0
    %32 = vmatpush1.msra.mxu0 0.0
    %33 = vmatprep.subr.mxu0 0.0
    %34 = vmatpush1.msra.mxu0 0.0
    %35 = vmatprep.subr.mxu0 0.0
    %36 = vmatpush1.msra.mxu0 0.0
    %37 = vmatprep.subr.mxu0 0.0
    %38 = vmatpush1.msra.mxu0 0.0
    %39 = vmatprep.subr.mxu0 0.0
    %40 = vmatpush1.msra.mxu0 0.0
    %41 = vmatprep.subr.mxu0 0.0
    %42 = vmatpush1.msra.mxu0 0.0
    %43 = vmatprep.subr.mxu0 0.0
    %44 = vmatpush1.msra.mxu0 0.0
    %45 = vmatprep.subr.mxu0 0.0
    %46 = vmatpush1.msra.mxu0 0.0
    %47 = vmatprep.subr.mxu0 0.0
    %48 = vmatpush1.msra.mxu0 0.0
    %49 = vmatprep.subr.mxu0 0.0
    %50 = vmatpush1.msra.mxu0 0.0
    %51 = vmatprep.subr.mxu0 0.0
    %52 = vmatpush1.msra.mxu0 0.0
    %53 = vmatprep.subr.mxu0 0.0
    %54 = vmatpush1.msra.mxu0 0.0
    %55 = vmatprep.subr.mxu0 0.0
    %56 = vmatpush1.msra.mxu0 %v19
    %57 = vmatprep.subr.mxu0 0.0
    %58 = vmatpush1.msra.mxu0 %v18
    %59 = vmatprep.subr.mxu0 0.0
    %60 = vmatpush1.msra.mxu0 %v17
    %61 = vmatprep.subr.mxu0 0.0
    %62 = vmatpush1.msra.mxu0 %v16
    %63 = vmatprep.subr.mxu0 0.0
    %64 = vmatpush2.msra.mxu0 0.0
    %65 = vmatprep.subr.mxu0 0.0
    %66 = vmatpush2.msra.mxu0 0.0
    %67 = vmatprep.subr.mxu0 0.0
    %68 = vmatpush2.msra.mxu0 0.0
    %69 = vmatprep.subr.mxu0 0.0
    %70 = vmatpush2.msra.mxu0 0.0
    %71 = vmatprep.subr.mxu0 0.0
    %72 = vmatpush2.msra.mxu0 0.0
    %73 = vmatprep.subr.mxu0 0.0
    %74 = vmatpush2.msra.mxu0 0.0
    %75 = vmatprep.subr.mxu0 0.0
    %76 = vmatpush2.msra.mxu0 0.0
    %77 = vmatprep.subr.mxu0 0.0
    %78 = vmatpush2.msra.mxu0 0.0
    %79 = vmatprep.subr.mxu0 0.0
    %80 = vmatpush2.msra.mxu0 0.0
    %81 = vmatprep.subr.mxu0 0.0
    %82 = vmatpush2.msra.mxu0 0.0
    %83 = vmatprep.subr.mxu0 0.0
    %84 = vmatpush2.msra.mxu0 0.0
    %85 = vmatprep.subr.mxu0 0.0
    %86 = vmatpush2.msra.mxu0 0.0
    %87 = vmatprep.subr.mxu0 0.0
    %88 = vmatpush2.msra.mxu0 0.0
    %89 = vmatprep.subr.mxu0 0.0
    %90 = vmatpush2.msra.mxu0 0.0
    %91 = vmatprep.subr.mxu0 0.0
    %92 = vmatpush2.msra.mxu0 0.0
    %93 = vmatprep.subr.mxu0 0.0
    %94 = vmatpush2.msra.mxu0 0.0
    %95 = vmatprep.mubr.f32.mxu0 0.0
    %96 = vmatmul.mubr.f32.gmra.mxu0 %v29
    %v97 = vpop.f32.mrf.mxu0
    %v98 = vadd.f32 %v25, %v97
    %v99 = vpop.f32.mrf.mxu0
    %100 = vdwg.mxu0
    %vm101 = vcmask 25600
    %102 = vst.msk [vmem:[#allocation2] sm:$0x3] %vm101, %v98
    // Predicated region
    $region14: #{tpu_custom_call.1} parent=1 // pred_check
      _
    $region15: #{tpu_custom_call.1} parent=1 // pred_check_branch
      %104 = sbr.rel (0) target = $region17
    $region16: #{tpu_custom_call.1} parent=1 // pred_region
      %s106 = ssub.s32 32, 32
      %107 = vsyncadd [#allocation3], %s106
      %s109 = sshll.u32 [#allocation2], 4
      %s110 = int_to_ptr.vmem [resolvable:$true] %s109
      %112 = dma.vmem_to_hbm [thread:$0]  %s110, 32, %s3, [#allocation3]
    $region17: #{tpu_custom_call.1} parent=1 // pred_fallthru
      _
    // Predicated region
    $region18: #{tpu_custom_call.1} parent=1 // pred_check
      _
    $region19: #{tpu_custom_call.1} parent=1 // pred_check_branch
      %114 = sbr.rel (0) target = $region21
    $region20: #{tpu_custom_call.1} parent=1 // pred_region
      %115 = dma.done [#allocation3], 32
    $region21: #{tpu_custom_call.1} parent=1 // pred_fallthru
      _
    %116 = vsyncpa [#allocation3], 1

</llo_original>
